<compile_context>
chip_gen: v7x
topology: tpu7x:2x2x1
jax: 0.10.0
libtpu: 0.0.40
codegen_flags: <defaults>
</compile_context>

<pallas_src>
import jax
import jax.numpy as jnp
from jax.experimental import pallas as pl
from jax.experimental.pallas import tpu as pltpu


def _make_linear_kernel(has_bias: bool, use_scratch: bool):
    """grid = (M blocks, N blocks, K blocks); reduction axis (k) innermost."""

    def kernel(*refs):
        if use_scratch:
            *in_refs, o_ref, acc_ref = refs
        else:
            *in_refs, o_ref = refs
            acc_ref = o_ref                 # accumulate straight into the f32 output block
        if has_bias:
            x_ref, w_ref, b_ref = in_refs
        else:
            x_ref, w_ref = in_refs
            b_ref = None

        @pl.when(pl.program_id(2) == 0)
        def _():
            if b_ref is None:
                acc_ref[...] = jnp.zeros_like(acc_ref)
            else:
                # Fold the bias into the accumulator init (added exactly once).
                acc_ref[...] = jnp.broadcast_to(
                    b_ref[...].astype(jnp.float32), acc_ref.shape)

        # x block: [tm, tk]; pre-transposed weight block: [tk, tn].
        # Canonical MXU contraction (RHS contraction on the sublane dim).
        acc_ref[...] += jax.lax.dot_general(
            x_ref[...],
            w_ref[...],
            dimension_numbers=(((1,), (0,)), ((), ())),
            preferred_element_type=jnp.float32,
        )

        if use_scratch:
            @pl.when(pl.program_id(2) == pl.num_programs(2) - 1)
            def _():
                o_ref[...] = acc_ref[...].astype(o_ref.dtype)

    return kernel


def _round_up(v, m):
    return ((v + m - 1) // m) * m


def _vmem_info():
    """(working-set budget bytes, physical VMEM capacity bytes)."""
    try:
        cap = int(pltpu.get_tpu_info().vmem_capacity_bytes)
    except Exception:
        cap = 64 << 20          # conservative (v7x-class) fallback
    return (cap * 3) // 4, cap  # leave headroom for Mosaic internal scratch


def prepare_weight(weight, compute_dtype=None):
    """One-time prep: [out_features, in_features] -> [in_features, out_features]
    (and optional cast).  Do this once per weight, outside the per-call path."""
    w_t = jnp.asarray(weight).T
    if compute_dtype is not None:
        w_t = w_t.astype(compute_dtype)
    return w_t


def fast_poincare_ball_linear(x, weight_t, bias=None, *, compute_dtype=None):
    """x: [..., in_features]; weight_t: [in_features, out_features] (see
    prepare_weight); bias: [out_features] or None.  Returns x @ weight_t + bias
    in x.dtype (f32 accumulation on the MXU)."""
    K, N = weight_t.shape
    lead_shape = x.shape[:-1]
    out_dtype = x.dtype

    x2d = x.reshape(-1, K)
    M = x2d.shape[0]

    # Optional lower-precision inputs for the MXU (accumulation stays f32).
    if compute_dtype is not None:
        x2d = x2d.astype(compute_dtype)
        if weight_t.dtype != compute_dtype:
            weight_t = weight_t.astype(compute_dtype)

    in_itemsize = jnp.dtype(x2d.dtype).itemsize
    out_itemsize = jnp.dtype(out_dtype).itemsize

    budget, vmem_cap = _vmem_info()

    # ---- Generation-aware tile caps (lane-dense multiples of 128) ----------
    if budget >= (80 << 20):            # v5e / v6e: 128 MiB physical VMEM
        tm_cap, tn_cap, tk_cap = 512, 1024, 1024
    else:                               # v7x-class: 64 MiB VMEM per TensorCore
        tm_cap, tn_cap, tk_cap = 512, 1024, 512

    tm = M if M <= tm_cap else tm_cap
    tn = N if N <= tn_cap else tn_cap

    # Only the K (reduction) axis needs real zero padding; partial M/N edge
    # blocks are handled by the cdiv grid and their OOB rows/cols discarded.
    if K <= tk_cap:
        tk, K_pad = K, K
    else:
        tk = tk_cap
        K_pad = _round_up(K, tk)

    m_blocks = pl.cdiv(M, tm)
    n_blocks = pl.cdiv(N, tn)
    k_blocks = K_pad // tk

    # Multi-TensorCore chips (v7x): ensure >= 2 parallel blocks so both TCs work.
    num_tc = 2 if vmem_cap <= (64 << 20) else 1
    if num_tc > 1 and m_blocks * n_blocks < num_tc:
        if tn >= 256 and tn % 256 == 0:
            tn //= 2
        elif tm >= 256 and tm % 16 == 0:
            tm //= 2
        m_blocks = pl.cdiv(M, tm)
        n_blocks = pl.cdiv(N, tn)

    # ---- Zero-pad the K axis only ------------------------------------------
    x_p = x2d if K_pad == K else jnp.pad(x2d, ((0, 0), (0, K_pad - K)))
    w_p = weight_t if K_pad == K else jnp.pad(weight_t, ((0, K_pad - K), (0, 0)))

    has_bias = bias is not None
    use_scratch = out_dtype != jnp.float32

    operands = [x_p, w_p]
    in_specs = [
        pl.BlockSpec((tm, tk), lambda i, j, k: (i, k)),   # x     [M, K_pad]
        pl.BlockSpec((tk, tn), lambda i, j, k: (k, j)),   # W^T   [K_pad, N]
    ]
    if has_bias:
        b2d = jnp.asarray(bias, dtype=jnp.float32).reshape(1, N)
        operands.append(b2d)
        in_specs.append(pl.BlockSpec((1, tn), lambda i, j, k: (0, j)))

    scratch_shapes = [pltpu.VMEM((tm, tn), jnp.float32)] if use_scratch else []

    # VMEM accounting: double-buffered I/O; bias tile sublane-pads to 8 rows.
    vmem_needed = (
        2 * (tm * tk + tk * tn) * in_itemsize
        + 2 * tm * tn * out_itemsize
        + (2 * 8 * tn * 4 if has_bias else 0)
        + (tm * tn * 4 if use_scratch else 0)
    )
    vmem_limit = min(max(int(vmem_needed * 1.25) + (2 << 20), 32 << 20), budget)

    cost = pl.CostEstimate(
        flops=2 * M * N * K_pad,
        transcendentals=0,
        bytes_accessed=(
            n_blocks * M * K_pad * in_itemsize        # x re-streamed per N block
            + m_blocks * K_pad * N * in_itemsize      # W re-streamed per M block
            + M * N * out_itemsize
            + (m_blocks * N * 4 if has_bias else 0)
        ),
    )

    out2d = pl.pallas_call(
        _make_linear_kernel(has_bias, use_scratch),
        out_shape=jax.ShapeDtypeStruct((M, N), out_dtype),
        grid_spec=pltpu.PrefetchScalarGridSpec(
            num_scalar_prefetch=0,
            grid=(m_blocks, n_blocks, k_blocks),
            in_specs=in_specs,
            out_specs=pl.BlockSpec((tm, tn), lambda i, j, k: (i, j)),
            scratch_shapes=scratch_shapes,
        ),
        compiler_params=pltpu.CompilerParams(
            dimension_semantics=("parallel", "parallel", "arbitrary"),
            vmem_limit_bytes=vmem_limit,
        ),
        cost_estimate=cost,
    )(*operands)

    return out2d.reshape(*lead_shape, N)


if __name__ == "__main__":
    # ---- Small config matching the module init (batch=2, seq=8, 32 -> 64) --
    in_features, out_features = 32, 64
    batch, seq = 2, 8

    key = jax.random.PRNGKey(0)
    k_x, k_w, k_x2, k_w2 = jax.random.split(key, 4)

    # weight = randn(out, in) * 0.1 ; bias = zeros(out)  (as in __init__)
    weight = jax.random.normal(k_w, (out_features, in_features), jnp.float32) * 0.1
    bias = jnp.zeros((out_features,), dtype=jnp.float32)
    x = jax.random.normal(k_x, (batch, seq, in_features), dtype=jnp.float32)

    weight_t = prepare_weight(weight)          # one-time [K, N] layout
    fwd = jax.jit(fast_poincare_ball_linear)

    out = jax.block_until_ready(fwd(x, weight_t, bias))
    ref = x @ weight.T + bias
    assert out.shape == (batch, seq, out_features)
    assert jnp.allclose(out, ref, atol=2e-3, rtol=2e-3)

    # ---- bias=None path (module with bias=False) ----------------------------
    out_nb = jax.block_until_ready(fwd(x, weight_t, None))
    assert jnp.allclose(out_nb, x @ weight.T, atol=2e-3, rtol=2e-3)

    # ---- Larger shape: exercises cdiv partial M/N blocks + K zero-padding ---
    M2, K2, N2 = 200, 1300, 1200
    w2 = jax.random.normal(k_w2, (N2, K2), jnp.float32) * 0.1
    b2 = jax.random.normal(k_x2, (N2,), jnp.float32) * 0.01
    x2 = jax.random.normal(k_x, (M2, K2), jnp.float32)
    out2 = jax.block_until_ready(fwd(x2, prepare_weight(w2), b2))
    ref2 = x2 @ w2.T + b2
    assert out2.shape == (M2, N2)
    assert jnp.allclose(out2, ref2, atol=2e-2, rtol=2e-2)

    print("KERNEL_OK")
</pallas_src>

<mosaic_0001>
module attributes {stable_mosaic.version = 11 : i64} {
  func.func @kernel(%arg0: i32, %arg1: i32, %arg2: i32, %arg3: memref<16x32xf32, #tpu.memory_space<vmem>>, %arg4: memref<32x64xf32, #tpu.memory_space<vmem>>, %arg5: memref<1x64xf32, #tpu.memory_space<vmem>>, %arg6: memref<16x64xf32, #tpu.memory_space<vmem>>) attributes {dimension_semantics = [#tpu.dimension_semantics<parallel>, #tpu.dimension_semantics<parallel>, #tpu.dimension_semantics<arbitrary>], iteration_bounds = array<i64: 1, 1, 1>, scalar_prefetch = 0 : i64, scratch_operands = 0 : i64, tpu.core_type = #tpu.core_type<tc>, window_params = [{transform_indices = @transform_0, window_bounds = array<i64: 16, 32>}, {transform_indices = @transform_1, window_bounds = array<i64: 32, 64>}, {transform_indices = @transform_2, window_bounds = array<i64: 1, 64>}, {transform_indices = @transform_3, window_bounds = array<i64: 16, 64>}]} {
    %c0_i32 = arith.constant 0 : i32
    %0 = arith.cmpi eq, %arg2, %c0_i32 : i32
    %1 = arith.extui %0 : i1 to i32
    %c0_i32_0 = arith.constant 0 : i32
    %2 = arith.cmpi ne, %1, %c0_i32_0 : i32
    scf.if %2 {
      %c0_8 = arith.constant 0 : index
      %c0_9 = arith.constant 0 : index
      %9 = vector.load %arg5[%c0_8, %c0_9] : memref<1x64xf32, #tpu.memory_space<vmem>>, vector<1x64xf32>
      %10 = vector.shape_cast %9 : vector<1x64xf32> to vector<1x64xf32>
      %11 = vector.broadcast %10 : vector<1x64xf32> to vector<16x64xf32>
      %c0_10 = arith.constant 0 : index
      %c0_11 = arith.constant 0 : index
      %12 = vector.load %arg6[%c0_10, %c0_11] : memref<16x64xf32, #tpu.memory_space<vmem>>, vector<16x64xf32>
      tpu.vector_store %arg6[%c0_10, %c0_11], %11 {strides = array<i32>} : memref<16x64xf32, #tpu.memory_space<vmem>>, vector<16x64xf32>,
    } else {
    }
    %c0 = arith.constant 0 : index
    %c0_1 = arith.constant 0 : index
    %3 = vector.load %arg6[%c0, %c0_1] : memref<16x64xf32, #tpu.memory_space<vmem>>, vector<16x64xf32>
    %c0_2 = arith.constant 0 : index
    %c0_3 = arith.constant 0 : index
    %4 = vector.load %arg3[%c0_2, %c0_3] : memref<16x32xf32, #tpu.memory_space<vmem>>, vector<16x32xf32>
    %c0_4 = arith.constant 0 : index
    %c0_5 = arith.constant 0 : index
    %5 = vector.load %arg4[%c0_4, %c0_5] : memref<32x64xf32, #tpu.memory_space<vmem>>, vector<32x64xf32>
    %cst = arith.constant dense<0.000000e+00> : vector<16x64xf32>
    %6 = tpu.matmul %4, %5, %cst {dimension_numbers = #tpu.dot_dimension_numbers<[1], [0], [0], [1], [0, 0, 1, 1], [], []>} : vector<16x32xf32>, vector<32x64xf32>, vector<16x64xf32> -> vector<16x64xf32>
    %7 = arith.addf %3, %6 : vector<16x64xf32>
    %c0_6 = arith.constant 0 : index
    %c0_7 = arith.constant 0 : index
    %8 = vector.load %arg6[%c0_6, %c0_7] : memref<16x64xf32, #tpu.memory_space<vmem>>, vector<16x64xf32>
    tpu.vector_store %arg6[%c0_6, %c0_7], %7 {strides = array<i32>} : memref<16x64xf32, #tpu.memory_space<vmem>>, vector<16x64xf32>,
    return
  }
  func.func @transform_0(%arg0: i32, %arg1: i32, %arg2: i32) -> (i32, i32) {
    %c0_i32 = arith.constant 0 : i32
    return %arg0, %arg2 : i32, i32
  }
  func.func @transform_1(%arg0: i32, %arg1: i32, %arg2: i32) -> (i32, i32) {
    %c0_i32 = arith.constant 0 : i32
    return %arg2, %arg1 : i32, i32
  }
  func.func @transform_2(%arg0: i32, %arg1: i32, %arg2: i32) -> (i32, i32) {
    %c0_i32 = arith.constant 0 : i32
    %c0_i32_0 = arith.constant 0 : i32
    return %c0_i32, %arg1 : i32, i32
  }
  func.func @transform_3(%arg0: i32, %arg1: i32, %arg2: i32) -> (i32, i32) {
    %c0_i32 = arith.constant 0 : i32
    return %arg0, %arg1 : i32, i32
  }
}

</mosaic_0001>

<llo_original>
// kernel: fast_poincare_ball_linear.1
$region0: #{fast_poincare_ball_linear.1}
  #allocation0 [shape = 'u32[]', space=smem, size = 0x4, offset = 0x4, fixed_abs, tag = 'smem constant byte address 0x4 - core index']
  #allocation1 [shape = 'u32[144,128]{1,0:T(1,128)}', space=vmem, size = 0x12000, scoped, tag = 'internal scratch']
  %s0 = inlined_call_operand.hbm [shape: f32[16,32], index: 0, kind: input, shape index: {}]
  %s1 = inlined_call_operand.hbm [shape: f32[32,64], index: 1, kind: input, shape index: {}]
  %s2 = inlined_call_operand.vmem [shape: f32[1,64], index: 2, kind: input, shape index: {}]
  %s3 = inlined_call_operand.hbm [shape: f32[16,64], index: 3, kind: output, shape index: {}]
  %s4 = sld [smem:[#allocation0]]
  $region34: #{fast_poincare_ball_linear.1} parent=0
    _
  %s6 = ssub.s32 1, %s4
  %s7 = scalar_select 0, %s6, %s4
  $region1: #{fast_poincare_ball_linear.1} parent=0
    #allocation2 [shape = 'u8[8192]{0}', space=vmem, size = 0x2000, scoped, tag = 'input window, operand 0, single buffered']
    #allocation3 [shape = 's32[1]{0}', space=sflag, size = 0x4, scoped, tag = 'scoped memory for fast_poincare_ball_linear.1']
    #allocation4 [shape = 's32[1]{0}', space=sflag, size = 0x4, scoped, tag = 'scoped memory for fast_poincare_ball_linear.1']
    #allocation5 [shape = 'u8[16384]{0}', space=vmem, size = 0x4000, scoped, tag = 'input window, operand 1, single buffered']
    #allocation6 [shape = 's32[1]{0}', space=sflag, size = 0x4, scoped, tag = 'scoped memory for fast_poincare_ball_linear.1']
    #allocation7 [shape = 'u8[8192]{0}', space=vmem, size = 0x2000, scoped, tag = 'output window, operand 0, single buffered']
    %8 = vsyncpa [#allocation3], 0
    %9 = vsyncpa [#allocation6], 0
    %10 = vsyncpa [#allocation4], 0
    // Predicated region
    $region2: #{fast_poincare_ball_linear.1} parent=1 // pred_check
      _
    $region3: #{fast_poincare_ball_linear.1} parent=1 // pred_check_branch
      %12 = sbr.rel (0) target = $region5
    $region4: #{fast_poincare_ball_linear.1} parent=1 // pred_region
      %s14 = ssub.s32 256, 256
      %15 = vsyncadd [#allocation3], %s14
      %s16 = sshll.u32 [#allocation2], 4
      %s17 = int_to_ptr.vmem [resolvable:$true] %s16
      %22 = dma.hbm_to_vmem [thread:$0]  %s0, 256, %s17, [#allocation3], 128, 128, 8
    $region5: #{fast_poincare_ball_linear.1} parent=1 // pred_fallthru
      _
    // Predicated region
    $region6: #{fast_poincare_ball_linear.1} parent=1 // pred_check
      _
    $region7: #{fast_poincare_ball_linear.1} parent=1 // pred_check_branch
      %24 = sbr.rel (0) target = $region9
    $region8: #{fast_poincare_ball_linear.1} parent=1 // pred_region
      %s26 = ssub.s32 512, 512
      %27 = vsyncadd [#allocation6], %s26
      %s28 = sshll.u32 [#allocation5], 4
      %s29 = int_to_ptr.vmem [resolvable:$true] %s28
      %34 = dma.hbm_to_vmem [thread:$0]  %s1, 512, %s29, [#allocation6], 128, 128, 8
    $region9: #{fast_poincare_ball_linear.1} parent=1 // pred_fallthru
      _
    // Predicated region
    $region10: #{fast_poincare_ball_linear.1} parent=1 // pred_check
      _
    $region11: #{fast_poincare_ball_linear.1} parent=1 // pred_check_branch
      %36 = sbr.rel (0) target = $region13
    $region12: #{fast_poincare_ball_linear.1} parent=1 // pred_region
      _
    $region13: #{fast_poincare_ball_linear.1} parent=1 // pred_fallthru
      _
    // Predicated region
    $region14: #{fast_poincare_ball_linear.1} parent=1 // pred_check
      _
    $region15: #{fast_poincare_ball_linear.1} parent=1 // pred_check_branch
      %38 = sbr.rel (0) target = $region17
    $region16: #{fast_poincare_ball_linear.1} parent=1 // pred_region
      %39 = dma.done [#allocation3], 256
    $region17: #{fast_poincare_ball_linear.1} parent=1 // pred_fallthru
      _
    // Predicated region
    $region18: #{fast_poincare_ball_linear.1} parent=1 // pred_check
      _
    $region19: #{fast_poincare_ball_linear.1} parent=1 // pred_check_branch
      %41 = sbr.rel (0) target = $region21
    $region20: #{fast_poincare_ball_linear.1} parent=1 // pred_region
      %42 = dma.done [#allocation6], 512
    $region21: #{fast_poincare_ball_linear.1} parent=1 // pred_fallthru
      _
    %p43 = scmp.eq.s32.totalorder 0, 0
    // Predicated region
    $region22: #{fast_poincare_ball_linear.1} parent=1 // pred_check
      %p44 = pneg %p43
    $region23: #{fast_poincare_ball_linear.1} parent=1 // pred_check_branch
      %46 = sbr.rel (%p44) target = $region25
    $region24: #{fast_poincare_ball_linear.1} parent=1 // pred_region
      %v47 = vld [vmem:[%s2] sm:$0x1]
      %v49 = vlaneseq
      %v50 = vshrl.u32 %v49, 7
      %v51 = vsub.s32 0, %v50
      %v52 = vrot.slane %v47, %v51
      %vm54 = vcmask 523264
      %55 = vst.msk [vmem:[#allocation7] sm:$0xff] %vm54, %v52
      %56 = vst.msk [vmem:[#allocation7 + $0x8] sm:$0xff] %vm54, %v52
    $region25: #{fast_poincare_ball_linear.1} parent=1 // pred_fallthru
      _
    %v57 = vld [vmem:[#allocation7] sm:$0xff]
    %v58 = vld [vmem:[#allocation7 + $0x8] sm:$0xff]
    %v59 = vld [vmem:[#allocation2] sm:$0xff]
    %v60 = vld [vmem:[#allocation2 + $0x8] sm:$0xff]
    %v61 = vld [vmem:[#allocation5] sm:$0xff]
    %v62 = vld [vmem:[#allocation5 + $0x8] sm:$0xff]
    %v63 = vld [vmem:[#allocation5 + $0x10] sm:$0xff]
    %v64 = vld [vmem:[#allocation5 + $0x18] sm:$0xff]
    %vm65 = vcmask 261120
    %v67 = vsel %vm65, %v59, 0
    %v70 = vsel %vm65, %v60, 0
    %72 = vmatprep.subr.mxu0 0.0
    %73 = vmatpush1.msra.mxu0 %v61
    %74 = vmatprep.subr.mxu0 0.0
    %75 = vmatpush1.msra.mxu0 %v62
    %76 = vmatprep.subr.mxu0 0.0
    %77 = vmatpush1.msra.mxu0 %v63
    %78 = vmatprep.subr.mxu0 0.0
    %79 = vmatpush1.msra.mxu0 %v64
    %80 = vmatprep.subr.mxu0 0.0
    %81 = vmatpush1.msra.mxu0 0.0
    %82 = vmatprep.subr.mxu0 0.0
    %83 = vmatpush1.msra.mxu0 0.0
    %84 = vmatprep.subr.mxu0 0.0
    %85 = vmatpush1.msra.mxu0 0.0
    %86 = vmatprep.subr.mxu0 0.0
    %87 = vmatpush1.msra.mxu0 0.0
    %88 = vmatprep.subr.mxu0 0.0
    %89 = vmatpush1.msra.mxu0 0.0
    %90 = vmatprep.subr.mxu0 0.0
    %91 = vmatpush1.msra.mxu0 0.0
    %92 = vmatprep.subr.mxu0 0.0
    %93 = vmatpush1.msra.mxu0 0.0
    %94 = vmatprep.subr.mxu0 0.0
    %95 = vmatpush1.msra.mxu0 0.0
    %96 = vmatprep.subr.mxu0 0.0
    %97 = vmatpush1.msra.mxu0 0.0
    %98 = vmatprep.subr.mxu0 0.0
    %99 = vmatpush1.msra.mxu0 0.0
    %100 = vmatprep.subr.mxu0 0.0
    %101 = vmatpush1.msra.mxu0 0.0
    %102 = vmatprep.subr.mxu0 0.0
    %103 = vmatpush1.msra.mxu0 0.0
    %104 = vmatprep.subr.mxu0 0.0
    %105 = vmatpush1.msra.mxu0 0.0
    %106 = vmatprep.subr.mxu0 0.0
    %107 = vmatpush1.msra.mxu0 0.0
    %108 = vmatprep.subr.mxu0 0.0
    %109 = vmatpush1.msra.mxu0 0.0
    %110 = vmatprep.subr.mxu0 0.0
    %111 = vmatpush1.msra.mxu0 0.0
    %112 = vmatprep.subr.mxu0 0.0
    %113 = vmatpush1.msra.mxu0 0.0
    %114 = vmatprep.subr.mxu0 0.0
    %115 = vmatpush1.msra.mxu0 0.0
    %116 = vmatprep.subr.mxu0 0.0
    %117 = vmatpush1.msra.mxu0 0.0
    %118 = vmatprep.subr.mxu0 0.0
    %119 = vmatpush1.msra.mxu0 0.0
    %120 = vmatprep.subr.mxu0 0.0
    %121 = vmatpush1.msra.mxu0 0.0
    %122 = vmatprep.subr.mxu0 0.0
    %123 = vmatpush1.msra.mxu0 0.0
    %124 = vmatprep.subr.mxu0 0.0
    %125 = vmatpush1.msra.mxu0 0.0
    %126 = vmatprep.subr.mxu0 0.0
    %127 = vmatpush1.msra.mxu0 0.0
    %128 = vmatprep.subr.mxu0 0.0
    %129 = vmatpush1.msra.mxu0 0.0
    %130 = vmatprep.subr.mxu0 0.0
    %131 = vmatpush1.msra.mxu0 0.0
    %132 = vmatprep.subr.mxu0 0.0
    %133 = vmatpush1.msra.mxu0 0.0
    %134 = vmatprep.subr.mxu0 0.0
    %135 = vmatpush1.msra.mxu0 0.0
    %136 = vmatprep.mubr.f32.mxu0 0.0
    %137 = vmatmul.mubr.f32.gmra.mrb[0].mxu0 %v67
    %v138 = vpop.f32.mrb[0].mxu0
    %v139 = vadd.f32 0.0, %v138
    %v140 = vpop.f32.mrb[0].mxu0
    %141 = vmatprep.mubr.f32.mxu0 0.0
    %142 = vmatmul.mubr.f32.gmra.mrb[0].mxu0 %v70
    %v143 = vpop.f32.mrb[0].mxu0
    %v144 = vadd.f32 0.0, %v143
    %v145 = vpop.f32.mrb[0].mxu0
    %146 = vdwg.mxu0
    %v147 = vadd.f32 %v57, %v139
    %v148 = vadd.f32 %v58, %v144
    %vm149 = vcmask 523264
    %150 = vst.msk [vmem:[#allocation7] sm:$0xff] %vm149, %v147
    %151 = vst.msk [vmem:[#allocation7 + $0x8] sm:$0xff] %vm149, %v148
    // Predicated region
    $region26: #{fast_poincare_ball_linear.1} parent=1 // pred_check
      _
    $region27: #{fast_poincare_ball_linear.1} parent=1 // pred_check_branch
      %153 = sbr.rel (0) target = $region29
    $region28: #{fast_poincare_ball_linear.1} parent=1 // pred_region
      %s155 = ssub.s32 256, 256
      %156 = vsyncadd [#allocation4], %s155
      %s157 = sshll.u32 [#allocation7], 4
      %s158 = int_to_ptr.vmem [resolvable:$true] %s157
      %163 = dma.vmem_to_hbm [thread:$0]  %s158, 256, %s3, [#allocation4], 128, 128, 8
    $region29: #{fast_poincare_ball_linear.1} parent=1 // pred_fallthru
      _
    // Predicated region
    $region30: #{fast_poincare_ball_linear.1} parent=1 // pred_check
      _
    $region31: #{fast_poincare_ball_linear.1} parent=1 // pred_check_branch
      %165 = sbr.rel (0) target = $region33
    $region32: #{fast_poincare_ball_linear.1} parent=1 // pred_region
      %166 = dma.done [#allocation4], 256
    $region33: #{fast_poincare_ball_linear.1} parent=1 // pred_fallthru
      _
    %167 = vsyncpa [#allocation3], 1
    %168 = vsyncpa [#allocation6], 1
    %169 = vsyncpa [#allocation4], 1

</llo_original>
